<compile_context>
chip_gen: v5e
topology: v5e:2x2
jax: 0.10.0
libtpu: 0.0.40
codegen_flags: <defaults>
</compile_context>

<pallas_src>
import functools

import jax
import jax.numpy as jnp
from jax import lax
from jax.experimental import pallas as pl
from jax.experimental.pallas import tpu as pltpu


def _ext_attention_pool_kernel(logits_ref, w_ref, b_ref, out_ref, *, inv_outputdim):
    """One grid step processes a block of Bb batches.

    logits_ref: (Bb, T, D)   w_ref: (O, D)   b_ref: (1, O)   out_ref: (Bb, O, T)
    """
    x = logits_ref[...]                       # (Bb, T, D), native dtype
    bb, t, d = x.shape
    o = w_ref.shape[0]
    w = w_ref[...]                            # (O, D)

    # --- attention linear. Fold batch into the M dimension so the MXU sees Bb*T
    # rows; contract D of x with D of W directly (no W.T transpose in the loop).
    if t % 8 == 0:  # layout-preserving collapse of (Bb, T) -> Bb*T
        x2 = x.reshape(bb * t, d)
        s = lax.dot_general(
            x2, w,
            dimension_numbers=(((1,), (1,)), ((), ())),
            preferred_element_type=jnp.float32,
        )                                     # (Bb*T, O) f32
        s = (s + b_ref[...]) * inv_outputdim
        s = s.reshape(bb, t, o)               # (Bb, T, O)
    else:
        s = lax.dot_general(
            x, w,
            dimension_numbers=(((2,), (1,)), ((), ())),
            preferred_element_type=jnp.float32,
        )                                     # (Bb, T, O)
        s = (s + b_ref[...]) * inv_outputdim

    # --- softmax over the time axis (pooldim = 1), in f32.
    m = jnp.max(s, axis=1, keepdims=True)     # (Bb, 1, O)
    e = jnp.exp(s - m)                        # (Bb, T, O)
    l = jnp.sum(e, axis=1, keepdims=True)     # (Bb, 1, O)
    w_x = e * pl.reciprocal(l, approx=True)   # normalization on the (idle) EUP slot

    # --- out[b, o, t] = sum_i x[b, t, i] * w_x[b, i, o]
    # Batched dot_general in the natively-supported form (contract x's lane dim
    # with w_x's sublane dim), then swap the two small minor dims.
    out_bto = lax.dot_general(
        x, w_x.astype(x.dtype),
        dimension_numbers=(((2,), (1,)), ((0,), (0,))),
        preferred_element_type=jnp.float32,
    )                                         # (Bb, T, O) f32
    out_ref[...] = jnp.swapaxes(out_bto, 1, 2).astype(out_ref.dtype)  # (Bb, O, T)


def ext_attention_pool(logits, decision, weight, bias, outputdim, *, block_b=None):
    """Pallas implementation of ExtAttentionPool.forward.

    `decision` is accepted for signature parity; the reference forward never uses it.
    """
    del decision  # unused in the reference forward
    B, T, D = logits.shape
    O = outputdim
    # Inherited from the PyTorch broadcast: forward() only works when T == inputdim.
    assert T == D, "ExtAttentionPool.forward broadcast requires time == inputdim"

    # Target ~128 MXU rows per grid step (v5e granularity; fine on v6e/v7x too).
    if block_b is None:
        block_b = max(1, 128 // T)
    block_b = max(1, min(block_b, B))
    grid_b = pl.cdiv(B, block_b)

    # Keep logits in their native dtype (bf16 stays bf16 -> half the HBM traffic);
    # tiny params follow logits' dtype, bias stays f32 for the f32 score math.
    w = weight.astype(logits.dtype)
    b2 = bias.reshape(1, O).astype(jnp.float32)
    out_dtype = logits.dtype

    in_item = jnp.dtype(logits.dtype).itemsize
    cost = pl.CostEstimate(
        flops=4 * B * T * D * O,                       # two matmuls
        transcendentals=B * T * O,                     # softmax exp
        bytes_accessed=(B * T * D) * in_item
        + (B * O * T) * jnp.dtype(out_dtype).itemsize
        + (O * D + O) * in_item,
    )

    out = pl.pallas_call(
        functools.partial(_ext_attention_pool_kernel, inv_outputdim=1.0 / O),
        out_shape=jax.ShapeDtypeStruct((B, O, T), out_dtype),
        grid_spec=pltpu.PrefetchScalarGridSpec(
            num_scalar_prefetch=0,
            grid=(grid_b,),
            in_specs=[
                pl.BlockSpec((block_b, T, D), lambda b: (b, 0, 0)),  # logits tile
                pl.BlockSpec((O, D), lambda b: (0, 0)),              # weight (resident)
                pl.BlockSpec((1, O), lambda b: (0, 0)),              # bias (resident)
            ],
            out_specs=pl.BlockSpec((block_b, O, T), lambda b: (b, 0, 0)),
        ),
        compiler_params=pltpu.CompilerParams(
            # Batch blocks are independent -> shard across both TensorCores on v7x.
            dimension_semantics=("parallel",),
        ),
        cost_estimate=cost,
    )(logits, w, b2)

    # flatten(-2) of the torch (B, T, O, T) product summed over pooldim is exactly
    # the row-major reshape of (B, O, T): flat index o*T + t. Metadata-only in XLA.
    return out.reshape(B, O * T)


def _ref_forward(logits, weight, bias, outputdim):
    # Pure-JAX reference reproducing the torch forward exactly.
    scores = (logits @ weight.T + bias) / outputdim      # (B, T, O)
    w_x = jax.nn.softmax(scores, axis=1)                 # softmax over T
    out = jnp.einsum("bti,bio->bot", logits, w_x)        # (B, O, T)
    return out.reshape(logits.shape[0], -1)


if __name__ == "__main__":
    T = D = 16   # torch broadcast in forward() requires time == inputdim
    O = 10

    key = jax.random.PRNGKey(0)
    k1, k2, k3, k4, k5 = jax.random.split(key, 5)

    # --- Case 1: module as constructed (zero-init attention params), B = 2.
    B = 2
    logits = jax.random.normal(k1, (B, T, D), dtype=jnp.float32)
    decision = jax.random.normal(k2, (B, T, O), dtype=jnp.float32)  # unused by forward
    weight = jnp.zeros((O, D), dtype=jnp.float32)
    bias = jnp.zeros((O,), dtype=jnp.float32)

    out = jax.block_until_ready(ext_attention_pool(logits, decision, weight, bias, O))
    ref = _ref_forward(logits, weight, bias, O)
    assert out.shape == (B, O * T), out.shape
    assert jnp.allclose(out, ref, atol=1e-5, rtol=1e-5), "mismatch (zero-init weights)"

    # --- Case 2: larger batch exercises the batched grid (Bb=8, 2 grid steps)
    # with non-trivial weights.
    B2 = 16
    logits2 = jax.random.normal(k3, (B2, T, D), dtype=jnp.float32)
    weight2 = 0.1 * jax.random.normal(k4, (O, D), dtype=jnp.float32)
    bias2 = 0.1 * jax.random.normal(k5, (O,), dtype=jnp.float32)
    out2 = jax.block_until_ready(ext_attention_pool(logits2, None, weight2, bias2, O))
    ref2 = _ref_forward(logits2, weight2, bias2, O)
    # Slightly looser tolerance: softmax denominator uses the EUP approx reciprocal.
    assert out2.shape == (B2, O * T), out2.shape
    assert jnp.allclose(out2, ref2, atol=2e-3, rtol=2e-3), "mismatch (random weights)"

    print("KERNEL_OK")
</pallas_src>

<mosaic_0001>
module attributes {stable_mosaic.version = 11 : i64} {
  func.func @_ext_attention_pool_kernel(%arg0: i32, %arg1: memref<2x16x16xf32, #tpu.memory_space<vmem>>, %arg2: memref<10x16xf32, #tpu.memory_space<vmem>>, %arg3: memref<1x10xf32, #tpu.memory_space<vmem>>, %arg4: memref<2x10x16xf32, #tpu.memory_space<vmem>>) attributes {dimension_semantics = [#tpu.dimension_semantics<parallel>], iteration_bounds = array<i64: 1>, scalar_prefetch = 0 : i64, scratch_operands = 0 : i64, tpu.core_type = #tpu.core_type<tc>, window_params = [{transform_indices = @transform_0, window_bounds = array<i64: 2, 16, 16>}, {pipeline_mode = #tpu.pipeline_mode<synchronous>, transform_indices = @transform_1, window_bounds = array<i64: 10, 16>}, {pipeline_mode = #tpu.pipeline_mode<synchronous>, transform_indices = @transform_2, window_bounds = array<i64: 1, 10>}, {transform_indices = @transform_3, window_bounds = array<i64: 2, 10, 16>}]} {
    %c0 = arith.constant 0 : index
    %c0_0 = arith.constant 0 : index
    %c0_1 = arith.constant 0 : index
    %0 = vector.load %arg1[%c0, %c0_0, %c0_1] : memref<2x16x16xf32, #tpu.memory_space<vmem>>, vector<2x16x16xf32>
    %c0_2 = arith.constant 0 : index
    %c0_3 = arith.constant 0 : index
    %1 = vector.load %arg2[%c0_2, %c0_3] : memref<10x16xf32, #tpu.memory_space<vmem>>, vector<10x16xf32>
    %2 = vector.shape_cast %0 : vector<2x16x16xf32> to vector<32x16xf32>
    %cst = arith.constant dense<0.000000e+00> : vector<32x10xf32>
    %3 = tpu.matmul %2, %1, %cst {dimension_numbers = #tpu.dot_dimension_numbers<[1], [1], [0], [0], [0, 0, 1, 0], [], []>} : vector<32x16xf32>, vector<10x16xf32>, vector<32x10xf32> -> vector<32x10xf32>
    %c0_4 = arith.constant 0 : index
    %c0_5 = arith.constant 0 : index
    %4 = vector.load %arg3[%c0_4, %c0_5] : memref<1x10xf32, #tpu.memory_space<vmem>>, vector<1x10xf32>
    %5 = vector.broadcast %4 : vector<1x10xf32> to vector<32x10xf32>
    %6 = arith.addf %3, %5 : vector<32x10xf32>
    %cst_6 = arith.constant 1.000000e-01 : f32
    %7 = vector.broadcast %cst_6 : f32 to vector<32x10xf32>
    %8 = arith.mulf %6, %7 : vector<32x10xf32>
    %9 = vector.shape_cast %8 : vector<32x10xf32> to vector<2x16x10xf32>
    %cst_7 = arith.constant dense<0xFF800000> : vector<2x10xf32>
    %10 = vector.multi_reduction <maximumf>, %9, %cst_7 [1] : vector<2x16x10xf32> to vector<2x10xf32>
    %11 = vector.shape_cast %10 : vector<2x10xf32> to vector<2x1x10xf32>
    %12 = vector.broadcast %11 : vector<2x1x10xf32> to vector<2x16x10xf32>
    %13 = arith.subf %9, %12 : vector<2x16x10xf32>
    %14 = math.exp %13 : vector<2x16x10xf32>
    %cst_8 = arith.constant dense<0.000000e+00> : vector<2x10xf32>
    %15 = vector.multi_reduction <add>, %14, %cst_8 [1] : vector<2x16x10xf32> to vector<2x10xf32>
    %16 = vector.shape_cast %15 : vector<2x10xf32> to vector<2x1x10xf32>
    %17 = tpu.reciprocal %16 {approx = true} : vector<2x1x10xf32> -> vector<2x1x10xf32>
    %18 = vector.broadcast %17 : vector<2x1x10xf32> to vector<2x16x10xf32>
    %19 = arith.mulf %14, %18 : vector<2x16x10xf32>
    %cst_9 = arith.constant dense<0.000000e+00> : vector<2x16x10xf32>
    %20 = tpu.matmul %0, %19, %cst_9 {dimension_numbers = #tpu.dot_dimension_numbers<[2], [1], [1], [2], [0, 0, 0, 1, 1, 2], [0], [0]>} : vector<2x16x16xf32>, vector<2x16x10xf32>, vector<2x16x10xf32> -> vector<2x16x10xf32>
    %21 = tpu.transpose %20, [0, 2, 1] : vector<2x16x10xf32> -> vector<2x10x16xf32>
    %c0_10 = arith.constant 0 : index
    %c0_11 = arith.constant 0 : index
    %c0_12 = arith.constant 0 : index
    %22 = vector.load %arg4[%c0_10, %c0_11, %c0_12] : memref<2x10x16xf32, #tpu.memory_space<vmem>>, vector<2x10x16xf32>
    tpu.vector_store %arg4[%c0_10, %c0_11, %c0_12], %21 {strides = array<i32>} : memref<2x10x16xf32, #tpu.memory_space<vmem>>, vector<2x10x16xf32>,
    return
  }
  func.func @transform_0(%arg0: i32) -> (i32, i32, i32) {
    %c0_i32 = arith.constant 0 : i32
    %c0_i32_0 = arith.constant 0 : i32
    %c0_i32_1 = arith.constant 0 : i32
    return %arg0, %c0_i32, %c0_i32_0 : i32, i32, i32
  }
  func.func @transform_1(%arg0: i32) -> (i32, i32) {
    %c0_i32 = arith.constant 0 : i32
    %c0_i32_0 = arith.constant 0 : i32
    %c0_i32_1 = arith.constant 0 : i32
    return %c0_i32, %c0_i32_0 : i32, i32
  }
  func.func @transform_2(%arg0: i32) -> (i32, i32) {
    %c0_i32 = arith.constant 0 : i32
    %c0_i32_0 = arith.constant 0 : i32
    %c0_i32_1 = arith.constant 0 : i32
    return %c0_i32, %c0_i32_0 : i32, i32
  }
  func.func @transform_3(%arg0: i32) -> (i32, i32, i32) {
    %c0_i32 = arith.constant 0 : i32
    %c0_i32_0 = arith.constant 0 : i32
    %c0_i32_1 = arith.constant 0 : i32
    return %arg0, %c0_i32, %c0_i32_0 : i32, i32, i32
  }
}

</mosaic_0001>

<llo_original>
// kernel: tpu_custom_call.1
$region0: #{tpu_custom_call.1}
  #allocation0 [shape = 'u32[]', space=smem, size = 0x4, offset = 0x4, fixed_abs, tag = 'smem constant byte address 0x4 - core index']
  #allocation1 [shape = 'u32[72,128]{1,0:T(1,128)}', space=vmem, size = 0x9000, scoped, tag = 'internal scratch']
  %s0 = inlined_call_operand.hbm [shape: f32[2,16,16], index: 0, kind: input, shape index: {}]
  %s1 = inlined_call_operand.hbm [shape: f32[10,16], index: 1, kind: input, shape index: {}]
  %s2 = inlined_call_operand.vmem [shape: f32[1,10], index: 2, kind: input, shape index: {}]
  %s3 = inlined_call_operand.vmem [shape: f32[2,10,16], index: 3, kind: output, shape index: {}]
  %s4 = sld [smem:[#allocation0]]
  $region30: #{tpu_custom_call.1} parent=0
    _
  %s6 = ssub.s32 1, %s4
  %s7 = scalar_select 0, %s6, %s4
  $region1: #{tpu_custom_call.1} parent=0
    #allocation2 [shape = 'u8[16384]{0}', space=vmem, size = 0x4000, scoped, tag = 'input window, operand 0, single buffered']
    #allocation3 [shape = 's32[1]{0}', space=sflag, size = 0x4, scoped, tag = 'scoped memory for tpu_custom_call.1']
    #allocation4 [shape = 'u8[8192]{0}', space=vmem, size = 0x2000, scoped, tag = 'input window, operand 1, single buffered']
    #allocation5 [shape = 's32[1]{0}', space=sflag, size = 0x4, scoped, tag = 'scoped memory for tpu_custom_call.1']
    %8 = vsyncpa [#allocation3], 0
    %9 = vsyncpa [#allocation5], 0
    // Predicated region
    $region2: #{tpu_custom_call.1} parent=1 // pred_check
      _
    $region3: #{tpu_custom_call.1} parent=1 // pred_check_branch
      %11 = sbr.rel (0) target = $region5
    $region4: #{tpu_custom_call.1} parent=1 // pred_region
      %13 = vsyncadd [#allocation3], 0
      %s14 = sshll.u32 %s0, 4
      %s15 = int_to_ptr.hbm [resolvable:$true] %s14
      %s16 = sshll.u32 [#allocation2], 4
      %s17 = int_to_ptr.vmem [resolvable:$true] %s16
      %22 = dma.hbm_to_vmem [thread:$0]  %s15, 512, %s17, [#allocation3], 128, 128, 8
    $region5: #{tpu_custom_call.1} parent=1 // pred_fallthru
      _
    // Predicated region
    $region6: #{tpu_custom_call.1} parent=1 // pred_check
      _
    $region7: #{tpu_custom_call.1} parent=1 // pred_check_branch
      %24 = sbr.rel (0) target = $region9
    $region8: #{tpu_custom_call.1} parent=1 // pred_region
      %26 = vsyncadd [#allocation5], 0
      %s27 = sshll.u32 %s1, 4
      %s28 = int_to_ptr.hbm [resolvable:$true] %s27
      %s29 = sshll.u32 [#allocation4], 4
      %s30 = int_to_ptr.vmem [resolvable:$true] %s29
      %35 = dma.hbm_to_vmem [thread:$0]  %s28, 256, %s30, [#allocation5], 128, 128, 8
    $region9: #{tpu_custom_call.1} parent=1 // pred_fallthru
      _
    // Predicated region
    $region10: #{tpu_custom_call.1} parent=1 // pred_check
      _
    $region11: #{tpu_custom_call.1} parent=1 // pred_check_branch
      %37 = sbr.rel (0) target = $region13
    $region12: #{tpu_custom_call.1} parent=1 // pred_region
      _
    $region13: #{tpu_custom_call.1} parent=1 // pred_fallthru
      _
    // Predicated region
    $region14: #{tpu_custom_call.1} parent=1 // pred_check
      _
    $region15: #{tpu_custom_call.1} parent=1 // pred_check_branch
      %39 = sbr.rel (0) target = $region17
    $region16: #{tpu_custom_call.1} parent=1 // pred_region
      %41 = dma.done [#allocation3], 512
    $region17: #{tpu_custom_call.1} parent=1 // pred_fallthru
      _
    // Predicated region
    $region18: #{tpu_custom_call.1} parent=1 // pred_check
      _
    $region19: #{tpu_custom_call.1} parent=1 // pred_check_branch
      %43 = sbr.rel (0) target = $region21
    $region20: #{tpu_custom_call.1} parent=1 // pred_region
      %45 = dma.done [#allocation5], 256
    $region21: #{tpu_custom_call.1} parent=1 // pred_fallthru
      _
    %v46 = vld [vmem:[#allocation2] sm:$0xff]
    %v47 = vld [vmem:[#allocation2 + $0x8] sm:$0xff]
    %v48 = vld [vmem:[#allocation2 + $0x10] sm:$0xff]
    %v49 = vld [vmem:[#allocation2 + $0x18] sm:$0xff]
    %v50 = vld [vmem:[#allocation4] sm:$0xff]
    %v51 = vld [vmem:[#allocation4 + $0x8] sm:$0x3]
    %v52 = vld [vmem:[%s2] sm:$0x1]
    %v54 = vperm.slane %v52, 0
    %vm56 = vcmask 130048
    %v58 = vsel %vm56, %v46, 0
    %v61 = vsel %vm56, %v47, 0
    %v64 = vsel %vm56, %v48, 0
    %v67 = vsel %vm56, %v49, 0
    %v70 = vsel %vm56, %v50, 0
    %v73 = vsel %vm56, %v51, 0
    %75 = vmatpush.xpose.msra.mxu0 0.0
    %76 = vmatpush.xpose.msra.mxu0 0.0
    %77 = vmatpush.xpose.msra.mxu0 0.0
    %78 = vmatpush.xpose.msra.mxu0 0.0
    %79 = vmatpush.xpose.msra.mxu0 0.0
    %80 = vmatpush.xpose.msra.mxu0 0.0
    %81 = vmatpush.xpose.msra.mxu0 0.0
    %82 = vmatpush.xpose.msra.mxu0 0.0
    %83 = vmatpush.xpose.msra.mxu0 0.0
    %84 = vmatpush.xpose.msra.mxu0 0.0
    %85 = vmatpush.xpose.msra.mxu0 0.0
    %86 = vmatpush.xpose.msra.mxu0 0.0
    %87 = vmatpush.xpose.msra.mxu0 0.0
    %88 = vmatpush.xpose.msra.mxu0 0.0
    %89 = vmatpush.xpose.msra.mxu0 %v73
    %90 = vmatpush.xpose.msra.mxu0 %v70
    %91 = vmatmul.f32.gmra.mxu0 %v58
    %v92 = vpop.f32.mrf.mxu0
    %v93 = vadd.f32 %v54, %v92
    %94 = vmatmul.f32.gmra.mxu0 %v61
    %v95 = vpop.f32.mrf.mxu0
    %v96 = vadd.f32 %v54, %v95
    %97 = vmatmul.f32.gmra.mxu0 %v64
    %v98 = vpop.f32.mrf.mxu0
    %v99 = vadd.f32 %v54, %v98
    %100 = vmatmul.f32.gmra.mxu0 %v67
    %v101 = vpop.f32.mrf.mxu0
    %v102 = vadd.f32 %v54, %v101
    %103 = vdwg.mxu0
    %v104 = vmul.f32 %v93, 0.1
    %v105 = vmul.f32 %v96, 0.1
    %v106 = vmul.f32 %v99, 0.1
    %v107 = vmul.f32 %v102, 0.1
    %vm108 = vcmask 80896
    %v109 = vsel %vm108, %v104, -inf
    %v110 = vsel %vm108, %v105, -inf
    %v111 = vmax.f32 %v109, %v110
    %v112 = vrot.slane %v111, 4
    %v113 = vmax.f32 %v111, %v112
    %v114 = vrot.slane %v113, 2
    %v115 = vmax.f32 %v113, %v114
    %v116 = vrot.slane %v115, 1
    %v117 = vmax.f32 %v115, %v116
    %v118 = vsel %vm108, %v106, -inf
    %v119 = vsel %vm108, %v107, -inf
    %v120 = vmax.f32 %v118, %v119
    %v121 = vrot.slane %v120, 4
    %v122 = vmax.f32 %v120, %v121
    %v123 = vrot.slane %v122, 2
    %v124 = vmax.f32 %v122, %v123
    %v125 = vrot.slane %v124, 1
    %v126 = vmax.f32 %v124, %v125
    %v127 = vsub.f32 %v104, %v117
    %v128 = vsub.f32 %v105, %v117
    %v129 = vsub.f32 %v106, %v126
    %v130 = vsub.f32 %v107, %v126
    %v131 = vmul.f32 %v127, 1.442695
    %v132 = vpow.pop %v131
    %v133 = vmul.f32 %v128, 1.442695
    %v134 = vpow.pop %v133
    %v135 = vmul.f32 %v129, 1.442695
    %v136 = vpow.pop %v135
    %v137 = vmul.f32 %v130, 1.442695
    %v138 = vpow.pop %v137
    %v139 = vsel %vm108, %v132, 0.0
    %v140 = vsel %vm108, %v134, 0.0
    %v141 = vadd.f32 %v139, %v140
    %v142 = vrot.slane %v141, 4
    %v143 = vadd.f32 %v141, %v142
    %v144 = vrot.slane %v143, 2
    %v145 = vadd.f32 %v143, %v144
    %v146 = vrot.slane %v145, 1
    %v147 = vadd.f32 %v145, %v146
    %v148 = vsel %vm108, %v136, 0.0
    %v149 = vsel %vm108, %v138, 0.0
    %v150 = vadd.f32 %v148, %v149
    %v151 = vrot.slane %v150, 4
    %v152 = vadd.f32 %v150, %v151
    %v153 = vrot.slane %v152, 2
    %v154 = vadd.f32 %v152, %v153
    %v155 = vrot.slane %v154, 1
    %v156 = vadd.f32 %v154, %v155
    %v157 = vrcp.pop %v147
    %v158 = vrcp.pop %v156
    %v159 = vmul.f32 %v132, %v157
    %v160 = vmul.f32 %v134, %v157
    %v161 = vmul.f32 %v136, %v158
    %v162 = vmul.f32 %v138, %v158
    %163 = vmatpush.msra.mxu0 0.0
    %164 = vmatpush.msra.mxu0 0.0
    %165 = vmatpush.msra.mxu0 0.0
    %166 = vmatpush.msra.mxu0 0.0
    %167 = vmatpush.msra.mxu0 0.0
    %168 = vmatpush.msra.mxu0 0.0
    %169 = vmatpush.msra.mxu0 0.0
    %170 = vmatpush.msra.mxu0 0.0
    %171 = vmatpush.msra.mxu0 0.0
    %172 = vmatpush.msra.mxu0 0.0
    %173 = vmatpush.msra.mxu0 0.0
    %174 = vmatpush.msra.mxu0 0.0
    %175 = vmatpush.msra.mxu0 0.0
    %176 = vmatpush.msra.mxu0 0.0
    %177 = vmatpush.msra.mxu0 %v160
    %178 = vmatpush.msra.mxu0 %v159
    %179 = vmatmul.f32.gmra.mxu0 %v58
    %v180 = vpop.f32.mrf.mxu0
    %v181 = vadd.f32 0.0, %v180
    %182 = vmatmul.f32.gmra.mxu0 %v61
    %v183 = vpop.f32.mrf.mxu0
    %v184 = vadd.f32 0.0, %v183
    %185 = vdwg.mxu0
    %186 = vmatpush.msra.mxu0 0.0
    %187 = vmatpush.msra.mxu0 0.0
    %188 = vmatpush.msra.mxu0 0.0
    %189 = vmatpush.msra.mxu0 0.0
    %190 = vmatpush.msra.mxu0 0.0
    %191 = vmatpush.msra.mxu0 0.0
    %192 = vmatpush.msra.mxu0 0.0
    %193 = vmatpush.msra.mxu0 0.0
    %194 = vmatpush.msra.mxu0 0.0
    %195 = vmatpush.msra.mxu0 0.0
    %196 = vmatpush.msra.mxu0 0.0
    %197 = vmatpush.msra.mxu0 0.0
    %198 = vmatpush.msra.mxu0 0.0
    %199 = vmatpush.msra.mxu0 0.0
    %200 = vmatpush.msra.mxu0 %v162
    %201 = vmatpush.msra.mxu0 %v161
    %202 = vmatmul.f32.gmra.mxu0 %v64
    %v203 = vpop.f32.mrf.mxu0
    %v204 = vadd.f32 0.0, %v203
    %205 = vmatmul.f32.gmra.mxu0 %v67
    %v206 = vpop.f32.mrf.mxu0
    %v207 = vadd.f32 0.0, %v206
    %208 = vdwg.mxu0
    %209 = vxpose.xlu0.b32.start [1/16] %v181, 128
    %210 = vxpose.xlu0.b32.cont [2/16] %v184, 128
    %211 = vxpose.xlu0.b32.cont [3/16] 0.0, 128
    %212 = vxpose.xlu0.b32.cont [4/16] 0.0, 128
    %213 = vxpose.xlu0.b32.cont [5/16] 0.0, 128
    %214 = vxpose.xlu0.b32.cont [6/16] 0.0, 128
    %215 = vxpose.xlu0.b32.cont [7/16] 0.0, 128
    %216 = vxpose.xlu0.b32.cont [8/16] 0.0, 128
    %217 = vxpose.xlu0.b32.cont [9/16] 0.0, 128
    %218 = vxpose.xlu0.b32.cont [10/16] 0.0, 128
    %219 = vxpose.xlu0.b32.cont [11/16] 0.0, 128
    %220 = vxpose.xlu0.b32.cont [12/16] 0.0, 128
    %221 = vxpose.xlu0.b32.cont [13/16] 0.0, 128
    %222 = vxpose.xlu0.b32.cont [14/16] 0.0, 128
    %223 = vxpose.xlu0.b32.cont [15/16] 0.0, 128
    %224 = vxpose.xlu0.b32.end [16/16] 0.0, 128
    %v225 = vpop.trf.xlu0
    %v226 = vpop.trf.xlu0
    %v227 = vpop.trf.xlu0
    %v228 = vpop.trf.xlu0
    %v229 = vpop.trf.xlu0
    %v230 = vpop.trf.xlu0
    %v231 = vpop.trf.xlu0
    %v232 = vpop.trf.xlu0
    %v233 = vpop.trf.xlu0
    %v234 = vpop.trf.xlu0
    %v235 = vpop.trf.xlu0
    %v236 = vpop.trf.xlu0
    %v237 = vpop.trf.xlu0
    %v238 = vpop.trf.xlu0
    %v239 = vpop.trf.xlu0
    %v240 = vpop.trf.xlu0
    %241 = vxpose.xlu0.b32.start [1/16] %v204, 128
    %242 = vxpose.xlu0.b32.cont [2/16] %v207, 128
    %243 = vxpose.xlu0.b32.cont [3/16] 0.0, 128
    %244 = vxpose.xlu0.b32.cont [4/16] 0.0, 128
    %245 = vxpose.xlu0.b32.cont [5/16] 0.0, 128
    %246 = vxpose.xlu0.b32.cont [6/16] 0.0, 128
    %247 = vxpose.xlu0.b32.cont [7/16] 0.0, 128
    %248 = vxpose.xlu0.b32.cont [8/16] 0.0, 128
    %249 = vxpose.xlu0.b32.cont [9/16] 0.0, 128
    %250 = vxpose.xlu0.b32.cont [10/16] 0.0, 128
    %251 = vxpose.xlu0.b32.cont [11/16] 0.0, 128
    %252 = vxpose.xlu0.b32.cont [12/16] 0.0, 128
    %253 = vxpose.xlu0.b32.cont [13/16] 0.0, 128
    %254 = vxpose.xlu0.b32.cont [14/16] 0.0, 128
    %255 = vxpose.xlu0.b32.cont [15/16] 0.0, 128
    %256 = vxpose.xlu0.b32.end [16/16] 0.0, 128
    %v257 = vpop.trf.xlu0
    %v258 = vpop.trf.xlu0
    %v259 = vpop.trf.xlu0
    %v260 = vpop.trf.xlu0
    %v261 = vpop.trf.xlu0
    %v262 = vpop.trf.xlu0
    %v263 = vpop.trf.xlu0
    %v264 = vpop.trf.xlu0
    %v265 = vpop.trf.xlu0
    %v266 = vpop.trf.xlu0
    %v267 = vpop.trf.xlu0
    %v268 = vpop.trf.xlu0
    %v269 = vpop.trf.xlu0
    %v270 = vpop.trf.xlu0
    %v271 = vpop.trf.xlu0
    %v272 = vpop.trf.xlu0
    %273 = vst.msk [vmem:[%s3] sm:$0xff] %vm56, %v225
    %vm274 = vcmask 123904
    %275 = vst.msk [vmem:[%s3 + $0x8] sm:$0x3] %vm274, %v226
    %276 = vst.msk [vmem:[%s3 + $0x10] sm:$0xff] %vm56, %v257
    %277 = vst.msk [vmem:[%s3 + $0x18] sm:$0x3] %vm274, %v258
    // Predicated region
    $region22: #{tpu_custom_call.1} parent=1 // pred_check
      _
    $region23: #{tpu_custom_call.1} parent=1 // pred_check_branch
      %279 = sbr.rel (0) target = $region25
    $region24: #{tpu_custom_call.1} parent=1 // pred_region
      _
    $region25: #{tpu_custom_call.1} parent=1 // pred_fallthru
      _
    // Predicated region
    $region26: #{tpu_custom_call.1} parent=1 // pred_check
      _
    $region27: #{tpu_custom_call.1} parent=1 // pred_check_branch
      %281 = sbr.rel (0) target = $region29
    $region28: #{tpu_custom_call.1} parent=1 // pred_region
      _
    $region29: #{tpu_custom_call.1} parent=1 // pred_fallthru
      _
    %282 = vsyncpa [#allocation3], 1
    %283 = vsyncpa [#allocation5], 1

</llo_original>
